<compile_context>
chip_gen: v6e
topology: v6e:2x2x1
jax: 0.10.0
libtpu: 0.0.40
codegen_flags: <defaults>
</compile_context>

<pallas_src>
import functools

import jax
import jax.numpy as jnp
from jax.experimental import pallas as pl
from jax.experimental.pallas import tpu as pltpu


def _round_up(x, m):
    return (x + m - 1) // m * m


def _shallow_decoder_kernel(x_ref, w1_ref, b1_ref, w2_ref, b2_ref, o_ref):
    # Layer 1: bf16 MXU matmul, f32 accumulate; bias + ReLU on the VPU in f32.
    h = jnp.dot(x_ref[...], w1_ref[...], preferred_element_type=jnp.float32)
    h = jnp.maximum(h + b1_ref[...], 0.0)              # (TM, 256) + (1, 256)
    # Layer 2: cast activations to bf16 for the MXU, accumulate in f32.
    z = jnp.dot(h.astype(w2_ref.dtype), w2_ref[...],
                preferred_element_type=jnp.float32)
    z = z + b2_ref[...]                                 # (TM, 640) + (1, 640)
    o_ref[...] = jax.nn.sigmoid(z).astype(o_ref.dtype)  # exp on the EUP


@functools.partial(jax.jit, static_argnames=("patch_size", "tm"))
def shallow_decoder_forward(x, w1, b1, w2, b2, *, patch_size=14, tm=256):
    """x: (N, input_dim) -> (N, 3, patch_size, patch_size)."""
    n, d = x.shape
    hid = w1.shape[1]
    out_dim = w2.shape[1]
    assert out_dim == 3 * patch_size * patch_size
    out_dtype = x.dtype

    # --- Lane-dense output: pad 3*p*p (588) up to a multiple of 128 (640). ---
    out_pad = _round_up(out_dim, 128)
    if out_pad != out_dim:
        w2p = jnp.pad(w2, ((0, 0), (0, out_pad - out_dim)))
        b2p = jnp.pad(b2, ((0, 0), (0, out_pad - out_dim)))
    else:
        w2p, b2p = w2, b2

    # --- Row tiling: pad N up to a multiple of the row tile. Prefer >=2 grid
    #     steps (when rows allow) so the parallel row axis can shard across
    #     the two v7x TensorCores. ---
    r8 = _round_up(n, 8)
    tm_eff = min(tm, r8)
    if r8 >= 16 and r8 <= tm_eff:
        tm_eff = _round_up((r8 + 1) // 2, 8)
    n_pad = _round_up(n, tm_eff)
    xp = jnp.pad(x, ((0, n_pad - n), (0, 0))) if n_pad != n else x

    # --- bf16 operands for the MXU (f32 accumulation inside the kernel). ---
    x_bf = xp.astype(jnp.bfloat16)
    w1_bf = w1.astype(jnp.bfloat16)
    w2_bf = w2p.astype(jnp.bfloat16)
    b1_f = b1.astype(jnp.float32)
    b2_f = b2p.astype(jnp.float32)

    grid = (n_pad // tm_eff,)

    out_itemsize = jnp.dtype(out_dtype).itemsize
    cost = pl.CostEstimate(
        flops=2 * n_pad * (d * hid + hid * out_pad),
        transcendentals=n_pad * out_pad,
        bytes_accessed=(x_bf.size * 2 + w1_bf.size * 2 + w2_bf.size * 2
                        + b1_f.size * 4 + b2_f.size * 4
                        + n_pad * out_pad * out_itemsize),
    )

    out2d = pl.pallas_call(
        _shallow_decoder_kernel,
        out_shape=jax.ShapeDtypeStruct((n_pad, out_pad), out_dtype),
        grid_spec=pltpu.PrefetchScalarGridSpec(
            num_scalar_prefetch=0,
            grid=grid,
            in_specs=[
                pl.BlockSpec((tm_eff, d), lambda i: (i, 0)),      # x row-tile
                pl.BlockSpec((d, hid), lambda i: (0, 0)),         # W1 (resident)
                pl.BlockSpec((1, hid), lambda i: (0, 0)),         # b1
                pl.BlockSpec((hid, out_pad), lambda i: (0, 0)),   # W2 (resident, padded)
                pl.BlockSpec((1, out_pad), lambda i: (0, 0)),     # b2 (padded)
            ],
            out_specs=pl.BlockSpec((tm_eff, out_pad), lambda i: (i, 0)),
        ),
        compiler_params=pltpu.CompilerParams(
            dimension_semantics=("parallel",)),
        cost_estimate=cost,
    )(x_bf, w1_bf, b1_f, w2_bf, b2_f)

    # Strip row / lane padding, then the NCHW view (pure metadata, like .view).
    out2d = out2d[:n, :out_dim]
    return out2d.reshape(-1, 3, patch_size, patch_size)


def init_params(key, input_dim=384, patch_size=14, dtype=jnp.float32):
    """Deterministic synthetic init mirroring nn.Linear shapes."""
    k1, k2, k3, k4 = jax.random.split(key, 4)
    hid = 256
    out_dim = 3 * patch_size * patch_size
    s1 = 1.0 / jnp.sqrt(jnp.asarray(input_dim, dtype))
    s2 = 1.0 / jnp.sqrt(jnp.asarray(hid, dtype))
    w1 = jax.random.uniform(k1, (input_dim, hid), dtype, -s1, s1)
    b1 = jax.random.uniform(k2, (1, hid), dtype, -s1, s1)
    w2 = jax.random.uniform(k3, (hid, out_dim), dtype, -s2, s2)
    b2 = jax.random.uniform(k4, (1, out_dim), dtype, -s2, s2)
    return w1, b1, w2, b2


if __name__ == "__main__":
    key = jax.random.PRNGKey(0)
    kx, kp = jax.random.split(key)

    # Small shapes consistent with the module: N tokens of the default 384-d
    # embedding, default patch_size=14 -> output (N, 3, 14, 14). N=20 also
    # exercises the row-padding / multi-step-grid path.
    N, INPUT_DIM, PATCH = 20, 384, 14
    x = jax.random.normal(kx, (N, INPUT_DIM), jnp.float32)
    w1, b1, w2, b2 = init_params(kp, INPUT_DIM, PATCH)

    out = shallow_decoder_forward(x, w1, b1, w2, b2, patch_size=PATCH)
    out = jax.block_until_ready(out)

    # Pure-JAX reference check of the fused MLP + reshape.
    ref = jax.nn.sigmoid(
        jnp.maximum(x @ w1 + b1, 0.0) @ w2 + b2
    ).reshape(-1, 3, PATCH, PATCH)
    assert out.shape == (N, 3, PATCH, PATCH), out.shape
    # bf16 MXU matmuls -> relaxed tolerance vs. the f32 reference.
    assert jnp.allclose(out, ref, atol=2e-2, rtol=2e-2), float(
        jnp.max(jnp.abs(out - ref)))

    print("KERNEL_OK")
</pallas_src>

<mosaic_0001>
module attributes {stable_mosaic.version = 11 : i64} {
  func.func @_shallow_decoder_kernel(%arg0: i32, %arg1: memref<16x384xbf16, #tpu.memory_space<vmem>>, %arg2: memref<384x256xbf16, #tpu.memory_space<vmem>>, %arg3: memref<1x256xf32, #tpu.memory_space<vmem>>, %arg4: memref<256x640xbf16, #tpu.memory_space<vmem>>, %arg5: memref<1x640xf32, #tpu.memory_space<vmem>>, %arg6: memref<16x640xf32, #tpu.memory_space<vmem>>) attributes {dimension_semantics = [#tpu.dimension_semantics<parallel>], iteration_bounds = array<i64: 2>, scalar_prefetch = 0 : i64, scratch_operands = 0 : i64, tpu.core_type = #tpu.core_type<tc>, window_params = [{transform_indices = @transform_0, window_bounds = array<i64: 16, 384>}, {pipeline_mode = #tpu.pipeline_mode<synchronous>, transform_indices = @transform_1, window_bounds = array<i64: 384, 256>}, {pipeline_mode = #tpu.pipeline_mode<synchronous>, transform_indices = @transform_2, window_bounds = array<i64: 1, 256>}, {pipeline_mode = #tpu.pipeline_mode<synchronous>, transform_indices = @transform_3, window_bounds = array<i64: 256, 640>}, {pipeline_mode = #tpu.pipeline_mode<synchronous>, transform_indices = @transform_4, window_bounds = array<i64: 1, 640>}, {transform_indices = @transform_5, window_bounds = array<i64: 16, 640>}]} {
    %c0 = arith.constant 0 : index
    %c0_0 = arith.constant 0 : index
    %0 = vector.load %arg1[%c0, %c0_0] : memref<16x384xbf16, #tpu.memory_space<vmem>>, vector<16x384xbf16>
    %c0_1 = arith.constant 0 : index
    %c0_2 = arith.constant 0 : index
    %1 = vector.load %arg2[%c0_1, %c0_2] : memref<384x256xbf16, #tpu.memory_space<vmem>>, vector<384x256xbf16>
    %cst = arith.constant dense<0.000000e+00> : vector<16x256xf32>
    %2 = tpu.matmul %0, %1, %cst {dimension_numbers = #tpu.dot_dimension_numbers<[1], [0], [0], [1], [0, 0, 1, 1], [], []>} : vector<16x384xbf16>, vector<384x256xbf16>, vector<16x256xf32> -> vector<16x256xf32>
    %c0_3 = arith.constant 0 : index
    %c0_4 = arith.constant 0 : index
    %3 = vector.load %arg3[%c0_3, %c0_4] : memref<1x256xf32, #tpu.memory_space<vmem>>, vector<1x256xf32>
    %4 = vector.broadcast %3 : vector<1x256xf32> to vector<16x256xf32>
    %5 = arith.addf %2, %4 : vector<16x256xf32>
    %cst_5 = arith.constant 0.000000e+00 : f32
    %6 = vector.broadcast %cst_5 : f32 to vector<16x256xf32>
    %7 = arith.maximumf %5, %6 : vector<16x256xf32>
    %8 = arith.truncf %7 : vector<16x256xf32> to vector<16x256xbf16>
    %c0_6 = arith.constant 0 : index
    %c0_7 = arith.constant 0 : index
    %9 = vector.load %arg4[%c0_6, %c0_7] : memref<256x640xbf16, #tpu.memory_space<vmem>>, vector<256x640xbf16>
    %cst_8 = arith.constant dense<0.000000e+00> : vector<16x640xf32>
    %10 = tpu.matmul %8, %9, %cst_8 {dimension_numbers = #tpu.dot_dimension_numbers<[1], [0], [0], [1], [0, 0, 1, 1], [], []>} : vector<16x256xbf16>, vector<256x640xbf16>, vector<16x640xf32> -> vector<16x640xf32>
    %c0_9 = arith.constant 0 : index
    %c0_10 = arith.constant 0 : index
    %11 = vector.load %arg5[%c0_9, %c0_10] : memref<1x640xf32, #tpu.memory_space<vmem>>, vector<1x640xf32>
    %12 = vector.broadcast %11 : vector<1x640xf32> to vector<16x640xf32>
    %13 = arith.addf %10, %12 : vector<16x640xf32>
    %14 = arith.negf %13 : vector<16x640xf32>
    %15 = math.exp %14 : vector<16x640xf32>
    %cst_11 = arith.constant 1.000000e+00 : f32
    %16 = vector.broadcast %cst_11 : f32 to vector<16x640xf32>
    %17 = arith.addf %16, %15 : vector<16x640xf32>
    %18 = arith.divf %16, %17 : vector<16x640xf32>
    %c0_12 = arith.constant 0 : index
    %c0_13 = arith.constant 0 : index
    %19 = vector.load %arg6[%c0_12, %c0_13] : memref<16x640xf32, #tpu.memory_space<vmem>>, vector<16x640xf32>
    tpu.vector_store %arg6[%c0_12, %c0_13], %18 {strides = array<i32>} : memref<16x640xf32, #tpu.memory_space<vmem>>, vector<16x640xf32>,
    return
  }
  func.func @transform_0(%arg0: i32) -> (i32, i32) {
    %c0_i32 = arith.constant 0 : i32
    %c0_i32_0 = arith.constant 0 : i32
    return %arg0, %c0_i32 : i32, i32
  }
  func.func @transform_1(%arg0: i32) -> (i32, i32) {
    %c0_i32 = arith.constant 0 : i32
    %c0_i32_0 = arith.constant 0 : i32
    %c0_i32_1 = arith.constant 0 : i32
    return %c0_i32, %c0_i32_0 : i32, i32
  }
  func.func @transform_2(%arg0: i32) -> (i32, i32) {
    %c0_i32 = arith.constant 0 : i32
    %c0_i32_0 = arith.constant 0 : i32
    %c0_i32_1 = arith.constant 0 : i32
    return %c0_i32, %c0_i32_0 : i32, i32
  }
  func.func @transform_3(%arg0: i32) -> (i32, i32) {
    %c0_i32 = arith.constant 0 : i32
    %c0_i32_0 = arith.constant 0 : i32
    %c0_i32_1 = arith.constant 0 : i32
    return %c0_i32, %c0_i32_0 : i32, i32
  }
  func.func @transform_4(%arg0: i32) -> (i32, i32) {
    %c0_i32 = arith.constant 0 : i32
    %c0_i32_0 = arith.constant 0 : i32
    %c0_i32_1 = arith.constant 0 : i32
    return %c0_i32, %c0_i32_0 : i32, i32
  }
  func.func @transform_5(%arg0: i32) -> (i32, i32) {
    %c0_i32 = arith.constant 0 : i32
    %c0_i32_0 = arith.constant 0 : i32
    return %arg0, %c0_i32 : i32, i32
  }
}

</mosaic_0001>

<llo_original>
// kernel: shallow_decoder_forward.1
$region0: #{shallow_decoder_forward.1}
  #allocation0 [shape = 'u32[]', space=smem, size = 0x4, offset = 0x4, fixed_abs, tag = 'smem constant byte address 0x4 - core index']
  #allocation1 [shape = 'u32[144,128]{1,0:T(1,128)}', space=vmem, size = 0x12000, scoped, tag = 'internal scratch']
  %s0 = inlined_call_operand.vmem [shape: bf16[32,384], index: 0, kind: input, shape index: {}]
  %s1 = inlined_call_operand.vmem [shape: bf16[384,256], index: 1, kind: input, shape index: {}]
  %s2 = inlined_call_operand.vmem [shape: f32[1,256], index: 2, kind: input, shape index: {}]
  %s3 = inlined_call_operand.vmem [shape: bf16[256,640], index: 3, kind: input, shape index: {}]
  %s4 = inlined_call_operand.vmem [shape: f32[1,640], index: 4, kind: input, shape index: {}]
  %s5 = inlined_call_operand.vmem [shape: f32[32,640], index: 5, kind: output, shape index: {}]
  %s6 = sld [smem:[#allocation0]]
  $region53: #{shallow_decoder_forward.1} parent=0
    _
  %s8 = ssub.s32 1, %s6
  %s9 = scalar_select 0, %s8, %s6
  loop: start=0, step=1, limit=4
  $region2: #{shallow_decoder_forward.1} parent=0 // loop_pre_header
    _
  $region3: #{shallow_decoder_forward.1} parent=0 // loop_header
    %s11 = sphi 0, %s15
    %p12 = scmp.ge.s32.totalorder %s11, 4
    %s21 = sphi 0, %s23
    %s24 = sphi 0, %s21
    %s25 = sphi 0, %s24
    %s41 = sphi 0, %s25
    %s45 = sphi 0, %s45
    %s47 = sphi 0, %s45
    %s48 = sphi 0, %s47
    %s62 = sphi 0, %s48
    %s66 = sphi 0, %s66
    %s68 = sphi 0, %s66
    %s69 = sphi 0, %s68
    %s83 = sphi 0, %s69
    %s87 = sphi 0, %s87
    %s89 = sphi 0, %s87
    %s90 = sphi 0, %s89
    %s104 = sphi 0, %s90
    %s108 = sphi 0, %s108
    %s110 = sphi 0, %s108
    %s111 = sphi 0, %s110
    %s125 = sphi 0, %s111
    %s131 = sphi 0, %s133
    %s134 = sphi 0, %s131
    %s135 = sphi 0, %s134
    %s151 = sphi 0, %s135
  $region4: #{shallow_decoder_forward.1} parent=0 // loop_header_branch
    %14 = sbr.rel (%p12) target = $region8
  $region5: #{shallow_decoder_forward.1} parent=0 // loop_body
    %s16 = ssub.s32 %s11, 1
    %s17 = ssub.s32 %s11, 2
    %s18 = sadd.s32 %s11, 1
    %s19 = ssub.s32 %s11, %s18
    %p20 = scmp.eq.s32.totalorder %s19, 0
    %s22 = sadd.s32 %s21, 1
    %s23 = scalar_select %p20, %s21, %s22
    %p26 = pneg %p20
    %p27 = scmp.eq.s32.totalorder %s11, 1
    %p28 = por %p26, %p27
    %p29 = scmp.ne.s32.totalorder %s21, %s24
    %p30 = scmp.eq.s32.totalorder %s11, 0
    %p31 = por %p29, %p30
    %p32 = scmp.ne.s32.totalorder %s21, %s24
    %p33 = scmp.eq.s32.totalorder %s16, 1
    %p34 = por %p32, %p33
    %p35 = scmp.ne.s32.totalorder %s24, %s25
    %p36 = scmp.eq.s32.totalorder %s16, 0
    %p37 = por %p35, %p36
    %p38 = scmp.ne.s32.totalorder %s24, %s25
    %p39 = scmp.eq.s32.totalorder %s17, 1
    %p40 = por %p38, %p39
    %p42 = scmp.ne.s32.totalorder %s25, %s41
    %p43 = scmp.eq.s32.totalorder %s17, 0
    %p44 = por %p42, %p43
    %s46 = sadd.s32 %s45, 1
    %p49 = scmp.eq.s32.totalorder %s11, 1
    %p50 = scmp.ne.s32.totalorder %s45, %s47
    %p51 = scmp.eq.s32.totalorder %s11, 0
    %p52 = por %p50, %p51
    %p53 = scmp.ne.s32.totalorder %s45, %s47
    %p54 = scmp.eq.s32.totalorder %s16, 1
    %p55 = por %p53, %p54
    %p56 = scmp.ne.s32.totalorder %s47, %s48
    %p57 = scmp.eq.s32.totalorder %s16, 0
    %p58 = por %p56, %p57
    %p59 = scmp.ne.s32.totalorder %s47, %s48
    %p60 = scmp.eq.s32.totalorder %s17, 1
    %p61 = por %p59, %p60
    %p63 = scmp.ne.s32.totalorder %s48, %s62
    %p64 = scmp.eq.s32.totalorder %s17, 0
    %p65 = por %p63, %p64
    %s67 = sadd.s32 %s66, 1
    %p70 = scmp.eq.s32.totalorder %s11, 1
    %p71 = scmp.ne.s32.totalorder %s66, %s68
    %p72 = scmp.eq.s32.totalorder %s11, 0
    %p73 = por %p71, %p72
    %p74 = scmp.ne.s32.totalorder %s66, %s68
    %p75 = scmp.eq.s32.totalorder %s16, 1
    %p76 = por %p74, %p75
    %p77 = scmp.ne.s32.totalorder %s68, %s69
    %p78 = scmp.eq.s32.totalorder %s16, 0
    %p79 = por %p77, %p78
    %p80 = scmp.ne.s32.totalorder %s68, %s69
    %p81 = scmp.eq.s32.totalorder %s17, 1
    %p82 = por %p80, %p81
    %p84 = scmp.ne.s32.totalorder %s69, %s83
    %p85 = scmp.eq.s32.totalorder %s17, 0
    %p86 = por %p84, %p85
    %s88 = sadd.s32 %s87, 1
    %p91 = scmp.eq.s32.totalorder %s11, 1
    %p92 = scmp.ne.s32.totalorder %s87, %s89
    %p93 = scmp.eq.s32.totalorder %s11, 0
    %p94 = por %p92, %p93
    %p95 = scmp.ne.s32.totalorder %s87, %s89
    %p96 = scmp.eq.s32.totalorder %s16, 1
    %p97 = por %p95, %p96
    %p98 = scmp.ne.s32.totalorder %s89, %s90
    %p99 = scmp.eq.s32.totalorder %s16, 0
    %p100 = por %p98, %p99
    %p101 = scmp.ne.s32.totalorder %s89, %s90
    %p102 = scmp.eq.s32.totalorder %s17, 1
    %p103 = por %p101, %p102
    %p105 = scmp.ne.s32.totalorder %s90, %s104
    %p106 = scmp.eq.s32.totalorder %s17, 0
    %p107 = por %p105, %p106
    %s109 = sadd.s32 %s108, 1
    %p112 = scmp.eq.s32.totalorder %s11, 1
    %p113 = scmp.ne.s32.totalorder %s108, %s110
    %p114 = scmp.eq.s32.totalorder %s11, 0
    %p115 = por %p113, %p114
    %p116 = scmp.ne.s32.totalorder %s108, %s110
    %p117 = scmp.eq.s32.totalorder %s16, 1
    %p118 = por %p116, %p117
    %p119 = scmp.ne.s32.totalorder %s110, %s111
    %p120 = scmp.eq.s32.totalorder %s16, 0
    %p121 = por %p119, %p120
    %p122 = scmp.ne.s32.totalorder %s110, %s111
    %p123 = scmp.eq.s32.totalorder %s17, 1
    %p124 = por %p122, %p123
    %p126 = scmp.ne.s32.totalorder %s111, %s125
    %p127 = scmp.eq.s32.totalorder %s17, 0
    %p128 = por %p126, %p127
    %s129 = ssub.s32 %s11, %s18
    %p130 = scmp.eq.s32.totalorder %s129, 0
    %s132 = sadd.s32 %s131, 1
    %s133 = scalar_select %p130, %s131, %s132
    %p136 = pneg %p130
    %p137 = scmp.eq.s32.totalorder %s11, 1
    %p138 = por %p136, %p137
    %p139 = scmp.ne.s32.totalorder %s131, %s134
    %p140 = scmp.eq.s32.totalorder %s11, 0
    %p141 = por %p139, %p140
    %p142 = scmp.ne.s32.totalorder %s131, %s134
    %p143 = scmp.eq.s32.totalorder %s16, 1
    %p144 = por %p142, %p143
    %p145 = scmp.ne.s32.totalorder %s134, %s135
    %p146 = scmp.eq.s32.totalorder %s16, 0
    %p147 = por %p145, %p146
    %p148 = scmp.ne.s32.totalorder %s134, %s135
    %p149 = scmp.eq.s32.totalorder %s17, 1
    %p150 = por %p148, %p149
    %p152 = scmp.ne.s32.totalorder %s135, %s151
    %p153 = scmp.eq.s32.totalorder %s17, 0
    %p154 = por %p152, %p153
    %p155 = scmp.le.s32.totalorder 1, %s11
    %p156 = scmp.lt.s32.totalorder %s11, 3
    %p157 = pnand %p155, %p156
    %p158 = pneg %p157
    // Predicated region
    $region9: #{shallow_decoder_forward.1} parent=5 // pred_check
      _
    $region10: #{shallow_decoder_forward.1} parent=5 // pred_check_branch
      %160 = sbr.rel (%p157) target = $region12
    $region11: #{shallow_decoder_forward.1} parent=5 // pred_region
      %s161 = ssub.s32 %s11, 1
      // Predicated region
      $region13: #{shallow_decoder_forward.1} parent=11 // pred_check
        %p162 = pneg %p58
      $region14: #{shallow_decoder_forward.1} parent=11 // pred_check_branch
        %164 = sbr.rel (%p162) target = $region16
      $region15: #{shallow_decoder_forward.1} parent=11 // pred_region
        _
      $region16: #{shallow_decoder_forward.1} parent=11 // pred_fallthru
        _
      // Predicated region
      $region17: #{shallow_decoder_forward.1} parent=11 // pred_check
        %p165 = pneg %p79
      $region18: #{shallow_decoder_forward.1} parent=11 // pred_check_branch
        %167 = sbr.rel (%p165) target = $region20
      $region19: #{shallow_decoder_forward.1} parent=11 // pred_region
        _
      $region20: #{shallow_decoder_forward.1} parent=11 // pred_fallthru
        _
      // Predicated region
      $region21: #{shallow_decoder_forward.1} parent=11 // pred_check
        %p168 = pneg %p100
      $region22: #{shallow_decoder_forward.1} parent=11 // pred_check_branch
        %170 = sbr.rel (%p168) target = $region24
      $region23: #{shallow_decoder_forward.1} parent=11 // pred_region
        _
      $region24: #{shallow_decoder_forward.1} parent=11 // pred_fallthru
        _
      // Predicated region
      $region25: #{shallow_decoder_forward.1} parent=11 // pred_check
        %p171 = pneg %p121
      $region26: #{shallow_decoder_forward.1} parent=11 // pred_check_branch
        %173 = sbr.rel (%p171) target = $region28
      $region27: #{shallow_decoder_forward.1} parent=11 // pred_region
        _
      $region28: #{shallow_decoder_forward.1} parent=11 // pred_fallthru
        _
    $region12: #{shallow_decoder_forward.1} parent=5 // pred_fallthru
      _
    %p174 = scmp.lt.s32.totalorder %s11, 2
    // Predicated region
    $region29: #{shallow_decoder_forward.1} parent=5 // pred_check
      %p175 = pneg %p174
    $region30: #{shallow_decoder_forward.1} parent=5 // pred_check_branch
      %177 = sbr.rel (%p175) target = $region32
    $region31: #{shallow_decoder_forward.1} parent=5 // pred_region
      // Predicated region
      $region33: #{shallow_decoder_forward.1} parent=31 // pred_check
        %p178 = pneg %p31
      $region34: #{shallow_decoder_forward.1} parent=31 // pred_check_branch
        %180 = sbr.rel (%p178) target = $region36
      $region35: #{shallow_decoder_forward.1} parent=31 // pred_region
        %s181 = smul.u32 2, %s11
        %p182 = scmp.lt.s32.totalorder %s181, 3
        %s183 = scalar_select %p182, %s181, 3
        %s184 = smul.addr %s183, 3
        %s185 = smul.addr %s184, 4
        %s186 = scalar_lea.vmem %s0, %s185
        %s187 = smul.u32 2, %s11
      $region36: #{shallow_decoder_forward.1} parent=31 // pred_fallthru
        _
    $region32: #{shallow_decoder_forward.1} parent=5 // pred_fallthru
      _
    %p188 = scmp.le.s32.totalorder 1, %s11
    %p189 = scmp.lt.s32.totalorder %s11, 3
    %p190 = pnand %p188, %p189
    %p191 = pneg %p190
    // Predicated region
    $region37: #{shallow_decoder_forward.1} parent=5 // pred_check
      _
    $region38: #{shallow_decoder_forward.1} parent=5 // pred_check_branch
      %193 = sbr.rel (%p190) target = $region40
    $region39: #{shallow_decoder_forward.1} parent=5 // pred_region
      %s194 = ssub.s32 %s11, 1
      %s195 = smul.u32 2, %s16
      %p196 = scmp.lt.s32.totalorder %s195, 3
      %s197 = scalar_select %p196, %s195, 3
      %s198 = smul.addr %s197, 3
      %s199 = smul.addr %s198, 4
      %s200 = scalar_lea.vmem %s0, %s199
      %p201 = pneg %p37
      %p202 = pneg %p34
      %p203 = pneg %p58
      %p204 = pneg %p55
      %p205 = pneg %p79
      %p206 = pneg %p76
      %p207 = pneg %p100
      %p208 = pneg %p97
      %p209 = pneg %p121
      %p210 = pneg %p118
      %p211 = pneg %p147
      %p212 = pneg %p144
      %s213 = smul.u32 2, %s16
      %p214 = scmp.lt.s32.totalorder %s213, 3
      %s215 = scalar_select %p214, %s213, 3
      %s216 = smul.addr %s215, 5
      %s217 = smul.addr %s216, 8
      %s218 = scalar_lea.vmem %s5, %s217
      %s219 = smul.u32 2, %s16
      %p220 = scmp.lt.s32.totalorder %s219, 3
      %s221 = scalar_select %p220, %s219, 3
      %s222 = smul.addr %s221, 3
      %s223 = smul.addr %s222, 4
      %s224 = scalar_lea.vmem %s0, %s223
      %s225 = smul.u32 2, %s16
      %s226 = smul.u32 2, %s16
      %p227 = scmp.lt.s32.totalorder %s226, 3
      %s228 = scalar_select %p227, %s226, 3
      %s229 = smul.addr %s228, 5
      %s230 = smul.addr %s229, 8
      %s231 = scalar_lea.vmem %s5, %s230
      %s232 = smul.u32 2, %s16
      %v234 = vld [vmem:[%s224] sm:$0xff]
      %v235 = vld [vmem:[%s224 + $0x8] sm:$0xf]
      %v236 = vld [vmem:[%s224 + $0xc] sm:$0xff]
      %v237 = vld [vmem:[%s224 + $0x14] sm:$0xf]
      %v238 = vld [vmem:[%s1] sm:$0xff]
      %v239 = vld [vmem:[%s1 + $0x8] sm:$0xff]
      %v240 = vld [vmem:[%s1 + $0x10] sm:$0xff]
      %v241 = vld [vmem:[%s1 + $0x18] sm:$0xff]
      %v242 = vld [vmem:[%s1 + $0x20] sm:$0xff]
      %v243 = vld [vmem:[%s1 + $0x28] sm:$0xff]
      %v244 = vld [vmem:[%s1 + $0x30] sm:$0xff]
      %v245 = vld [vmem:[%s1 + $0x38] sm:$0xff]
      %v246 = vld [vmem:[%s1 + $0x40] sm:$0xff]
      %v247 = vld [vmem:[%s1 + $0x48] sm:$0xff]
      %v248 = vld [vmem:[%s1 + $0x50] sm:$0xff]
      %v249 = vld [vmem:[%s1 + $0x58] sm:$0xff]
      %v250 = vld [vmem:[%s1 + $0x60] sm:$0xff]
      %v251 = vld [vmem:[%s1 + $0x68] sm:$0xff]
      %v252 = vld [vmem:[%s1 + $0x70] sm:$0xff]
      %v253 = vld [vmem:[%s1 + $0x78] sm:$0xff]
      %v254 = vld [vmem:[%s1 + $0x80] sm:$0xff]
      %v255 = vld [vmem:[%s1 + $0x88] sm:$0xff]
      %v256 = vld [vmem:[%s1 + $0x90] sm:$0xff]
      %v257 = vld [vmem:[%s1 + $0x98] sm:$0xff]
      %v258 = vld [vmem:[%s1 + $0xa0] sm:$0xff]
      %v259 = vld [vmem:[%s1 + $0xa8] sm:$0xff]
      %v260 = vld [vmem:[%s1 + $0xb0] sm:$0xff]
      %v261 = vld [vmem:[%s1 + $0xb8] sm:$0xff]
      %v262 = vld [vmem:[%s1 + $0xc0] sm:$0xff]
      %v263 = vld [vmem:[%s1 + $0xc8] sm:$0xff]
      %v264 = vld [vmem:[%s1 + $0xd0] sm:$0xff]
      %v265 = vld [vmem:[%s1 + $0xd8] sm:$0xff]
      %v266 = vld [vmem:[%s1 + $0xe0] sm:$0xff]
      %v267 = vld [vmem:[%s1 + $0xe8] sm:$0xff]
      %v268 = vld [vmem:[%s1 + $0xf0] sm:$0xff]
      %v269 = vld [vmem:[%s1 + $0xf8] sm:$0xff]
      %v270 = vld [vmem:[%s1 + $0x100] sm:$0xff]
      %v271 = vld [vmem:[%s1 + $0x108] sm:$0xff]
      %v272 = vld [vmem:[%s1 + $0x110] sm:$0xff]
      %v273 = vld [vmem:[%s1 + $0x118] sm:$0xff]
      %v274 = vld [vmem:[%s1 + $0x120] sm:$0xff]
      %v275 = vld [vmem:[%s1 + $0x128] sm:$0xff]
      %v276 = vld [vmem:[%s1 + $0x130] sm:$0xff]
      %v277 = vld [vmem:[%s1 + $0x138] sm:$0xff]
      %v278 = vld [vmem:[%s1 + $0x140] sm:$0xff]
      %v279 = vld [vmem:[%s1 + $0x148] sm:$0xff]
      %v280 = vld [vmem:[%s1 + $0x150] sm:$0xff]
      %v281 = vld [vmem:[%s1 + $0x158] sm:$0xff]
      %v282 = vld [vmem:[%s1 + $0x160] sm:$0xff]
      %v283 = vld [vmem:[%s1 + $0x168] sm:$0xff]
      %v284 = vld [vmem:[%s1 + $0x170] sm:$0xff]
      %v285 = vld [vmem:[%s1 + $0x178] sm:$0xff]
      %v286 = vld [vmem:[%s2] sm:$0x3]
      %v288 = vlaneseq
      %v289 = vshrl.u32 %v288, 7
      %v290 = vsub.s32 0, %v289
      %v291 = vrot.slane %v286, %v290
      %v292 = vlaneseq
      %v293 = vshrl.u32 %v292, 7
      %v294 = vsub.s32 1, %v293
      %v295 = vrot.slane %v286, %v294
      %v302 = vunpack.c.l.b16 %v234
      %v303 = vunpack.c.h.b16 %v234
      %v304 = vunpack.c.l.b16 %v235
      %v305 = vunpack.c.l.b16 %v236
      %v306 = vunpack.c.h.b16 %v236
      %v307 = vunpack.c.l.b16 %v237
      %v308 = vpack.c.b16 %v305, %v302
      %v309 = vpack.c.b16 %v306, %v303
      %v310 = vpack.c.b16 %v307, %v304
      %v362 = vunpack.c.l.b16 %v238
      %v363 = vunpack.c.h.b16 %v238
      %v364 = vunpack.c.l.b16 %v239
      %v365 = vunpack.c.h.b16 %v239
      %v366 = vunpack.c.l.b16 %v240
      %v367 = vunpack.c.h.b16 %v240
      %v368 = vunpack.c.l.b16 %v241
      %v369 = vunpack.c.h.b16 %v241
      %v370 = vunpack.c.l.b16 %v242
      %v371 = vunpack.c.h.b16 %v242
      %v372 = vunpack.c.l.b16 %v243
      %v373 = vunpack.c.h.b16 %v243
      %v374 = vunpack.c.l.b16 %v244
      %v375 = vunpack.c.h.b16 %v244
      %v376 = vunpack.c.l.b16 %v245
      %v377 = vunpack.c.h.b16 %v245
      %v378 = vunpack.c.l.b16 %v246
      %v379 = vunpack.c.h.b16 %v246
      %v380 = vunpack.c.l.b16 %v247
      %v381 = vunpack.c.h.b16 %v247
      %v382 = vunpack.c.l.b16 %v248
      %v383 = vunpack.c.h.b16 %v248
      %v384 = vunpack.c.l.b16 %v249
      %v385 = vunpack.c.h.b16 %v249
      %v386 = vunpack.c.l.b16 %v250
      %v387 = vunpack.c.h.b16 %v250
      %v388 = vunpack.c.l.b16 %v251
      %v389 = vunpack.c.h.b16 %v251
      %v390 = vunpack.c.l.b16 %v252
      %v391 = vunpack.c.h.b16 %v252
      %v392 = vunpack.c.l.b16 %v253
      %v393 = vunpack.c.h.b16 %v253
      %v394 = vunpack.c.l.b16 %v254
      %v395 = vunpack.c.h.b16 %v254
      %v396 = vunpack.c.l.b16 %v255
      %v397 = vunpack.c.h.b16 %v255
      %v398 = vunpack.c.l.b16 %v256
      %v399 = vunpack.c.h.b16 %v256
      %v400 = vunpack.c.l.b16 %v257
      %v401 = vunpack.c.h.b16 %v257
      %v402 = vunpack.c.l.b16 %v258
      %v403 = vunpack.c.h.b16 %v258
      %v404 = vunpack.c.l.b16 %v259
      %v405 = vunpack.c.h.b16 %v259
      %v406 = vunpack.c.l.b16 %v260
      %v407 = vunpack.c.h.b16 %v260
      %v408 = vunpack.c.l.b16 %v261
      %v409 = vunpack.c.h.b16 %v261
      %v410 = vunpack.c.l.b16 %v262
      %v411 = vunpack.c.h.b16 %v262
      %v412 = vunpack.c.l.b16 %v263
      %v413 = vunpack.c.h.b16 %v263
      %v414 = vunpack.c.l.b16 %v264
      %v415 = vunpack.c.h.b16 %v264
      %v416 = vunpack.c.l.b16 %v265
      %v417 = vunpack.c.h.b16 %v265
      %v418 = vunpack.c.l.b16 %v266
      %v419 = vunpack.c.h.b16 %v266
      %v420 = vunpack.c.l.b16 %v267
      %v421 = vunpack.c.h.b16 %v267
      %v422 = vunpack.c.l.b16 %v268
      %v423 = vunpack.c.h.b16 %v268
      %v424 = vunpack.c.l.b16 %v269
      %v425 = vunpack.c.h.b16 %v269
      %v426 = vunpack.c.l.b16 %v270
      %v427 = vunpack.c.h.b16 %v270
      %v428 = vunpack.c.l.b16 %v271
      %v429 = vunpack.c.h.b16 %v271
      %v430 = vunpack.c.l.b16 %v272
      %v431 = vunpack.c.h.b16 %v272
      %v432 = vunpack.c.l.b16 %v273
      %v433 = vunpack.c.h.b16 %v273
      %v434 = vunpack.c.l.b16 %v274
      %v435 = vunpack.c.h.b16 %v274
      %v436 = vunpack.c.l.b16 %v275
      %v437 = vunpack.c.h.b16 %v275
      %v438 = vunpack.c.l.b16 %v276
      %v439 = vunpack.c.h.b16 %v276
      %v440 = vunpack.c.l.b16 %v277
      %v441 = vunpack.c.h.b16 %v277
      %v442 = vunpack.c.l.b16 %v278
      %v443 = vunpack.c.h.b16 %v278
      %v444 = vunpack.c.l.b16 %v279
      %v445 = vunpack.c.h.b16 %v279
      %v446 = vunpack.c.l.b16 %v280
      %v447 = vunpack.c.h.b16 %v280
      %v448 = vunpack.c.l.b16 %v281
      %v449 = vunpack.c.h.b16 %v281
      %v450 = vunpack.c.l.b16 %v282
      %v451 = vunpack.c.h.b16 %v282
      %v452 = vunpack.c.l.b16 %v283
      %v453 = vunpack.c.h.b16 %v283
      %v454 = vunpack.c.l.b16 %v284
      %v455 = vunpack.c.h.b16 %v284
      %v456 = vunpack.c.l.b16 %v285
      %v457 = vunpack.c.h.b16 %v285
      %v458 = vpack.c.b16 %v364, %v362
      %v459 = vpack.c.b16 %v365, %v363
      %v460 = vpack.c.b16 %v368, %v366
      %v461 = vpack.c.b16 %v369, %v367
      %v462 = vpack.c.b16 %v372, %v370
      %v463 = vpack.c.b16 %v373, %v371
      %v464 = vpack.c.b16 %v376, %v374
      %v465 = vpack.c.b16 %v377, %v375
      %v466 = vpack.c.b16 %v380, %v378
      %v467 = vpack.c.b16 %v381, %v379
      %v468 = vpack.c.b16 %v384, %v382
      %v469 = vpack.c.b16 %v385, %v383
      %v470 = vpack.c.b16 %v388, %v386
      %v471 = vpack.c.b16 %v389, %v387
      %v472 = vpack.c.b16 %v392, %v390
      %v473 = vpack.c.b16 %v393, %v391
      %v474 = vpack.c.b16 %v396, %v394
      %v475 = vpack.c.b16 %v397, %v395
      %v476 = vpack.c.b16 %v400, %v398
      %v477 = vpack.c.b16 %v401, %v399
      %v478 = vpack.c.b16 %v404, %v402
      %v479 = vpack.c.b16 %v405, %v403
      %v480 = vpack.c.b16 %v408, %v406
      %v481 = vpack.c.b16 %v409, %v407
      %v482 = vpack.c.b16 %v412, %v410
      %v483 = vpack.c.b16 %v413, %v411
      %v484 = vpack.c.b16 %v416, %v414
      %v485 = vpack.c.b16 %v417, %v415
      %v486 = vpack.c.b16 %v420, %v418
      %v487 = vpack.c.b16 %v421, %v419
      %v488 = vpack.c.b16 %v424, %v422
      %v489 = vpack.c.b16 %v425, %v423
      %v490 = vpack.c.b16 %v428, %v426
      %v491 = vpack.c.b16 %v429, %v427
      %v492 = vpack.c.b16 %v432, %v430
      %v493 = vpack.c.b16 %v433, %v431
      %v494 = vpack.c.b16 %v436, %v434
      %v495 = vpack.c.b16 %v437, %v435
      %v496 = vpack.c.b16 %v440, %v438
      %v497 = vpack.c.b16 %v441, %v439
      %v498 = vpack.c.b16 %v444, %v442
      %v499 = vpack.c.b16 %v445, %v443
      %v500 = vpack.c.b16 %v448, %v446
      %v501 = vpack.c.b16 %v449, %v447
      %v502 = vpack.c.b16 %v452, %v450
      %v503 = vpack.c.b16 %v453, %v451
      %v504 = vpack.c.b16 %v456, %v454
      %v505 = vpack.c.b16 %v457, %v455
      %554 = vmatprep.subr.bf16.mxu0 %v473
      %555 = vmatpush1.bf16.msra.mxu0 %v472
      %556 = vmatprep.subr.bf16.mxu0 %v471
      %557 = vmatpush1.bf16.msra.mxu0 %v470
      %558 = vmatprep.subr.bf16.mxu0 %v469
      %559 = vmatpush1.bf16.msra.mxu0 %v468
      %560 = vmatprep.subr.bf16.mxu0 %v467
      %561 = vmatpush1.bf16.msra.mxu0 %v466
      %562 = vmatprep.subr.bf16.mxu0 %v465
      %563 = vmatpush1.bf16.msra.mxu0 %v464
      %564 = vmatprep.subr.bf16.mxu0 %v463
      %565 = vmatpush1.bf16.msra.mxu0 %v462
      %566 = vmatprep.subr.bf16.mxu0 %v461
      %567 = vmatpush1.bf16.msra.mxu0 %v460
      %568 = vmatprep.subr.bf16.mxu0 %v459
      %569 = vmatpush1.bf16.msra.mxu0 %v458
      %570 = vmatprep.subr.bf16.mxu0 %v489
      %571 = vmatpush2.bf16.msra.mxu0 %v488
      %572 = vmatprep.subr.bf16.mxu0 %v487
      %573 = vmatpush2.bf16.msra.mxu0 %v486
      %574 = vmatprep.subr.bf16.mxu0 %v485
      %575 = vmatpush2.bf16.msra.mxu0 %v484
      %576 = vmatprep.subr.bf16.mxu0 %v483
      %577 = vmatpush2.bf16.msra.mxu0 %v482
      %578 = vmatprep.subr.bf16.mxu0 %v481
      %579 = vmatpush2.bf16.msra.mxu0 %v480
      %580 = vmatprep.subr.bf16.mxu0 %v479
      %581 = vmatpush2.bf16.msra.mxu0 %v478
      %582 = vmatprep.subr.bf16.mxu0 %v477
      %583 = vmatpush2.bf16.msra.mxu0 %v476
      %584 = vmatprep.subr.bf16.mxu0 %v475
      %585 = vmatpush2.bf16.msra.mxu0 %v474
      %586 = vmatprep.mubr.bf16.mxu0 %v309
      %587 = vmatmul.mubr.bf16.gmra.mxu0 %v308
      %v588 = vpop.f32.mrf.mxu0
      %v589 = vadd.f32 %v291, %v588
      %v590 = vpop.f32.mrf.mxu0
      %v591 = vadd.f32 %v295, %v590
      %v592 = vpop.f32.mrf.mxu0
      %v593 = vadd.f32 %v291, %v592
      %v594 = vpop.f32.mrf.mxu0
      %v595 = vadd.f32 %v295, %v594
      %596 = vdwg.mxu0
      %597 = vmatprep.subr.bf16.mxu0 %v505
      %598 = vmatpush1.bf16.msra.mxu0 %v504
      %599 = vmatprep.subr.bf16.mxu0 %v503
      %600 = vmatpush1.bf16.msra.mxu0 %v502
      %601 = vmatprep.subr.bf16.mxu0 %v501
      %602 = vmatpush1.bf16.msra.mxu0 %v500
      %603 = vmatprep.subr.bf16.mxu0 %v499
      %604 = vmatpush1.bf16.msra.mxu0 %v498
      %605 = vmatprep.subr.bf16.mxu0 %v497
      %606 = vmatpush1.bf16.msra.mxu0 %v496
      %607 = vmatprep.subr.bf16.mxu0 %v495
      %608 = vmatpush1.bf16.msra.mxu0 %v494
      %609 = vmatprep.subr.bf16.mxu0 %v493
      %610 = vmatpush1.bf16.msra.mxu0 %v492
      %611 = vmatprep.subr.bf16.mxu0 %v491
      %612 = vmatpush1.bf16.msra.mxu0 %v490
      %613 = vmatprep.subr.bf16.mxu0 0
      %614 = vmatpush2.bf16.msra.mxu0 0
      %615 = vmatprep.subr.bf16.mxu0 0
      %616 = vmatpush2.bf16.msra.mxu0 0
      %617 = vmatprep.subr.bf16.mxu0 0
      %618 = vmatpush2.bf16.msra.mxu0 0
      %619 = vmatprep.subr.bf16.mxu0 0
      %620 = vmatpush2.bf16.msra.mxu0 0
      %621 = vmatprep.subr.bf16.mxu0 0
      %622 = vmatpush2.bf16.msra.mxu0 0
      %623 = vmatprep.subr.bf16.mxu0 0
      %624 = vmatpush2.bf16.msra.mxu0 0
      %625 = vmatprep.subr.bf16.mxu0 0
      %626 = vmatpush2.bf16.msra.mxu0 0
      %627 = vmatprep.subr.bf16.mxu0 0
      %628 = vmatpush2.bf16.msra.mxu0 0
      %629 = vmatprep.mubr.bf16.mxu0 0
      %630 = vmatmul.mubr.bf16.gmra.mxu0 %v310
      %v631 = vpop.f32.mrf.mxu0
      %v632 = vadd.f32 %v589, %v631
      %v633 = vpop.f32.mrf.mxu0
      %v634 = vadd.f32 %v591, %v633
      %v635 = vpop.f32.mrf.mxu0
      %v636 = vadd.f32 %v593, %v635
      %v637 = vpop.f32.mrf.mxu0
      %v638 = vadd.f32 %v595, %v637
      %639 = vdwg.mxu0
      %v640 = vmax.f32 %v632, 0.0
      %v641 = vmax.f32 %v634, 0.0
      %v642 = vmax.f32 %v636, 0.0
      %v643 = vmax.f32 %v638, 0.0
      %v644 = vpack.c.bf16 %v642, %v640
      %v645 = vpack.c.bf16 %v643, %v641
      %v646 = vld [vmem:[%s3] sm:$0xff]
      %v647 = vld [vmem:[%s3 + $0x8] sm:$0xff]
      %v648 = vld [vmem:[%s3 + $0x10] sm:$0xf]
      %v649 = vld [vmem:[%s3 + $0x14] sm:$0xff]
      %v650 = vld [vmem:[%s3 + $0x1c] sm:$0xff]
      %v651 = vld [vmem:[%s3 + $0x24] sm:$0xf]
      %v652 = vld [vmem:[%s3 + $0x28] sm:$0xff]
      %v653 = vld [vmem:[%s3 + $0x30] sm:$0xff]
      %v654 = vld [vmem:[%s3 + $0x38] sm:$0xf]
      %v655 = vld [vmem:[%s3 + $0x3c] sm:$0xff]
      %v656 = vld [vmem:[%s3 + $0x44] sm:$0xff]
      %v657 = vld [vmem:[%s3 + $0x4c] sm:$0xf]
      %v658 = vld [vmem:[%s3 + $0x50] sm:$0xff]
      %v659 = vld [vmem:[%s3 + $0x58] sm:$0xff]
      %v660 = vld [vmem:[%s3 + $0x60] sm:$0xf]
      %v661 = vld [vmem:[%s3 + $0x64] sm:$0xff]
      %v662 = vld [vmem:[%s3 + $0x6c] sm:$0xff]
      %v663 = vld [vmem:[%s3 + $0x74] sm:$0xf]
      %v664 = vld [vmem:[%s3 + $0x78] sm:$0xff]
      %v665 = vld [vmem:[%s3 + $0x80] sm:$0xff]
      %v666 = vld [vmem:[%s3 + $0x88] sm:$0xf]
      %v667 = vld [vmem:[%s3 + $0x8c] sm:$0xff]
      %v668 = vld [vmem:[%s3 + $0x94] sm:$0xff]
      %v669 = vld [vmem:[%s3 + $0x9c] sm:$0xf]
      %v670 = vld [vmem:[%s3 + $0xa0] sm:$0xff]
      %v671 = vld [vmem:[%s3 + $0xa8] sm:$0xff]
      %v672 = vld [vmem:[%s3 + $0xb0] sm:$0xf]
      %v673 = vld [vmem:[%s3 + $0xb4] sm:$0xff]
      %v674 = vld [vmem:[%s3 + $0xbc] sm:$0xff]
      %v675 = vld [vmem:[%s3 + $0xc4] sm:$0xf]
      %v676 = vld [vmem:[%s3 + $0xc8] sm:$0xff]
      %v677 = vld [vmem:[%s3 + $0xd0] sm:$0xff]
      %v678 = vld [vmem:[%s3 + $0xd8] sm:$0xf]
      %v679 = vld [vmem:[%s3 + $0xdc] sm:$0xff]
      %v680 = vld [vmem:[%s3 + $0xe4] sm:$0xff]
      %v681 = vld [vmem:[%s3 + $0xec] sm:$0xf]
      %v682 = vld [vmem:[%s3 + $0xf0] sm:$0xff]
      %v683 = vld [vmem:[%s3 + $0xf8] sm:$0xff]
      %v684 = vld [vmem:[%s3 + $0x100] sm:$0xf]
      %v685 = vld [vmem:[%s3 + $0x104] sm:$0xff]
      %v686 = vld [vmem:[%s3 + $0x10c] sm:$0xff]
      %v687 = vld [vmem:[%s3 + $0x114] sm:$0xf]
      %v688 = vld [vmem:[%s3 + $0x118] sm:$0xff]
      %v689 = vld [vmem:[%s3 + $0x120] sm:$0xff]
      %v690 = vld [vmem:[%s3 + $0x128] sm:$0xf]
      %v691 = vld [vmem:[%s3 + $0x12c] sm:$0xff]
      %v692 = vld [vmem:[%s3 + $0x134] sm:$0xff]
      %v693 = vld [vmem:[%s3 + $0x13c] sm:$0xf]
      %v694 = vld [vmem:[%s3 + $0x140] sm:$0xff]
      %v695 = vld [vmem:[%s3 + $0x148] sm:$0xff]
      %v696 = vld [vmem:[%s3 + $0x150] sm:$0xf]
      %v697 = vld [vmem:[%s3 + $0x154] sm:$0xff]
      %v698 = vld [vmem:[%s3 + $0x15c] sm:$0xff]
      %v699 = vld [vmem:[%s3 + $0x164] sm:$0xf]
      %v700 = vld [vmem:[%s3 + $0x168] sm:$0xff]
      %v701 = vld [vmem:[%s3 + $0x170] sm:$0xff]
      %v702 = vld [vmem:[%s3 + $0x178] sm:$0xf]
      %v703 = vld [vmem:[%s3 + $0x17c] sm:$0xff]
      %v704 = vld [vmem:[%s3 + $0x184] sm:$0xff]
      %v705 = vld [vmem:[%s3 + $0x18c] sm:$0xf]
      %v706 = vld [vmem:[%s3 + $0x190] sm:$0xff]
      %v707 = vld [vmem:[%s3 + $0x198] sm:$0xff]
      %v708 = vld [vmem:[%s3 + $0x1a0] sm:$0xf]
      %v709 = vld [vmem:[%s3 + $0x1a4] sm:$0xff]
      %v710 = vld [vmem:[%s3 + $0x1ac] sm:$0xff]
      %v711 = vld [vmem:[%s3 + $0x1b4] sm:$0xf]
      %v712 = vld [vmem:[%s3 + $0x1b8] sm:$0xff]
      %v713 = vld [vmem:[%s3 + $0x1c0] sm:$0xff]
      %v714 = vld [vmem:[%s3 + $0x1c8] sm:$0xf]
      %v715 = vld [vmem:[%s3 + $0x1cc] sm:$0xff]
      %v716 = vld [vmem:[%s3 + $0x1d4] sm:$0xff]
      %v717 = vld [vmem:[%s3 + $0x1dc] sm:$0xf]
      %v718 = vld [vmem:[%s3 + $0x1e0] sm:$0xff]
      %v719 = vld [vmem:[%s3 + $0x1e8] sm:$0xff]
      %v720 = vld [vmem:[%s3 + $0x1f0] sm:$0xf]
      %v721 = vld [vmem:[%s3 + $0x1f4] sm:$0xff]
      %v722 = vld [vmem:[%s3 + $0x1fc] sm:$0xff]
      %v723 = vld [vmem:[%s3 + $0x204] sm:$0xf]
      %v724 = vld [vmem:[%s3 + $0x208] sm:$0xff]
      %v725 = vld [vmem:[%s3 + $0x210] sm:$0xff]
      %v726 = vld [vmem:[%s3 + $0x218] sm:$0xf]
      %v727 = vld [vmem:[%s3 + $0x21c] sm:$0xff]
      %v728 = vld [vmem:[%s3 + $0x224] sm:$0xff]
      %v729 = vld [vmem:[%s3 + $0x22c] sm:$0xf]
      %v730 = vld [vmem:[%s3 + $0x230] sm:$0xff]
      %v731 = vld [vmem:[%s3 + $0x238] sm:$0xff]
      %v732 = vld [vmem:[%s3 + $0x240] sm:$0xf]
      %v733 = vld [vmem:[%s3 + $0x244] sm:$0xff]
      %v734 = vld [vmem:[%s3 + $0x24c] sm:$0xff]
      %v735 = vld [vmem:[%s3 + $0x254] sm:$0xf]
      %v736 = vld [vmem:[%s3 + $0x258] sm:$0xff]
      %v737 = vld [vmem:[%s3 + $0x260] sm:$0xff]
      %v738 = vld [vmem:[%s3 + $0x268] sm:$0xf]
      %v739 = vld [vmem:[%s3 + $0x26c] sm:$0xff]
      %v740 = vld [vmem:[%s3 + $0x274] sm:$0xff]
      %v741 = vld [vmem:[%s3 + $0x27c] sm:$0xf]
      %v742 = vld [vmem:[%s4] sm:$0x1f]
      %v744 = vlaneseq
      %v745 = vshrl.u32 %v744, 7
      %v746 = vsub.s32 0, %v745
      %v747 = vrot.slane %v742, %v746
      %v748 = vlaneseq
      %v749 = vshrl.u32 %v748, 7
      %v750 = vsub.s32 1, %v749
      %v751 = vrot.slane %v742, %v750
      %v752 = vlaneseq
      %v753 = vshrl.u32 %v752, 7
      %v754 = vsub.s32 2, %v753
      %v755 = vrot.slane %v742, %v754
      %v756 = vlaneseq
      %v757 = vshrl.u32 %v756, 7
      %v758 = vsub.s32 3, %v757
      %v759 = vrot.slane %v742, %v758
      %v760 = vlaneseq
      %v761 = vshrl.u32 %v760, 7
      %v762 = vsub.s32 4, %v761
      %v763 = vrot.slane %v742, %v762
      %v865 = vunpack.c.l.b16 %v646
      %v866 = vunpack.c.h.b16 %v646
      %v867 = vunpack.c.l.b16 %v647
      %v868 = vunpack.c.h.b16 %v647
      %v869 = vunpack.c.l.b16 %v648
      %v870 = vunpack.c.l.b16 %v649
      %v871 = vunpack.c.h.b16 %v649
      %v872 = vunpack.c.l.b16 %v650
      %v873 = vunpack.c.h.b16 %v650
      %v874 = vunpack.c.l.b16 %v651
      %v875 = vunpack.c.l.b16 %v652
      %v876 = vunpack.c.h.b16 %v652
      %v877 = vunpack.c.l.b16 %v653
      %v878 = vunpack.c.h.b16 %v653
      %v879 = vunpack.c.l.b16 %v654
      %v880 = vunpack.c.l.b16 %v655
      %v881 = vunpack.c.h.b16 %v655
      %v882 = vunpack.c.l.b16 %v656
      %v883 = vunpack.c.h.b16 %v656
      %v884 = vunpack.c.l.b16 %v657
      %v885 = vunpack.c.l.b16 %v658
      %v886 = vunpack.c.h.b16 %v658
      %v887 = vunpack.c.l.b16 %v659
      %v888 = vunpack.c.h.b16 %v659
      %v889 = vunpack.c.l.b16 %v660
      %v890 = vunpack.c.l.b16 %v661
      %v891 = vunpack.c.h.b16 %v661
      %v892 = vunpack.c.l.b16 %v662
      %v893 = vunpack.c.h.b16 %v662
      %v894 = vunpack.c.l.b16 %v663
      %v895 = vunpack.c.l.b16 %v664
      %v896 = vunpack.c.h.b16 %v664
      %v897 = vunpack.c.l.b16 %v665
      %v898 = vunpack.c.h.b16 %v665
      %v899 = vunpack.c.l.b16 %v666
      %v900 = vunpack.c.l.b16 %v667
      %v901 = vunpack.c.h.b16 %v667
      %v902 = vunpack.c.l.b16 %v668
      %v903 = vunpack.c.h.b16 %v668
      %v904 = vunpack.c.l.b16 %v669
      %v905 = vunpack.c.l.b16 %v670
      %v906 = vunpack.c.h.b16 %v670
      %v907 = vunpack.c.l.b16 %v671
      %v908 = vunpack.c.h.b16 %v671
      %v909 = vunpack.c.l.b16 %v672
      %v910 = vunpack.c.l.b16 %v673
      %v911 = vunpack.c.h.b16 %v673
      %v912 = vunpack.c.l.b16 %v674
      %v913 = vunpack.c.h.b16 %v674
      %v914 = vunpack.c.l.b16 %v675
      %v915 = vunpack.c.l.b16 %v676
      %v916 = vunpack.c.h.b16 %v676
      %v917 = vunpack.c.l.b16 %v677
      %v918 = vunpack.c.h.b16 %v677
      %v919 = vunpack.c.l.b16 %v678
      %v920 = vunpack.c.l.b16 %v679
      %v921 = vunpack.c.h.b16 %v679
      %v922 = vunpack.c.l.b16 %v680
      %v923 = vunpack.c.h.b16 %v680
      %v924 = vunpack.c.l.b16 %v681
      %v925 = vunpack.c.l.b16 %v682
      %v926 = vunpack.c.h.b16 %v682
      %v927 = vunpack.c.l.b16 %v683
      %v928 = vunpack.c.h.b16 %v683
      %v929 = vunpack.c.l.b16 %v684
      %v930 = vunpack.c.l.b16 %v685
      %v931 = vunpack.c.h.b16 %v685
      %v932 = vunpack.c.l.b16 %v686
      %v933 = vunpack.c.h.b16 %v686
      %v934 = vunpack.c.l.b16 %v687
      %v935 = vunpack.c.l.b16 %v688
      %v936 = vunpack.c.h.b16 %v688
      %v937 = vunpack.c.l.b16 %v689
      %v938 = vunpack.c.h.b16 %v689
      %v939 = vunpack.c.l.b16 %v690
      %v940 = vunpack.c.l.b16 %v691
      %v941 = vunpack.c.h.b16 %v691
      %v942 = vunpack.c.l.b16 %v692
      %v943 = vunpack.c.h.b16 %v692
      %v944 = vunpack.c.l.b16 %v693
      %v945 = vunpack.c.l.b16 %v694
      %v946 = vunpack.c.h.b16 %v694
      %v947 = vunpack.c.l.b16 %v695
      %v948 = vunpack.c.h.b16 %v695
      %v949 = vunpack.c.l.b16 %v696
      %v950 = vunpack.c.l.b16 %v697
      %v951 = vunpack.c.h.b16 %v697
      %v952 = vunpack.c.l.b16 %v698
      %v953 = vunpack.c.h.b16 %v698
      %v954 = vunpack.c.l.b16 %v699
      %v955 = vunpack.c.l.b16 %v700
      %v956 = vunpack.c.h.b16 %v700
      %v957 = vunpack.c.l.b16 %v701
      %v958 = vunpack.c.h.b16 %v701
      %v959 = vunpack.c.l.b16 %v702
      %v960 = vunpack.c.l.b16 %v703
      %v961 = vunpack.c.h.b16 %v703
      %v962 = vunpack.c.l.b16 %v704
      %v963 = vunpack.c.h.b16 %v704
      %v964 = vunpack.c.l.b16 %v705
      %v965 = vunpack.c.l.b16 %v706
      %v966 = vunpack.c.h.b16 %v706
      %v967 = vunpack.c.l.b16 %v707
      %v968 = vunpack.c.h.b16 %v707
      %v969 = vunpack.c.l.b16 %v708
      %v970 = vunpack.c.l.b16 %v709
      %v971 = vunpack.c.h.b16 %v709
      %v972 = vunpack.c.l.b16 %v710
      %v973 = vunpack.c.h.b16 %v710
      %v974 = vunpack.c.l.b16 %v711
      %v975 = vunpack.c.l.b16 %v712
      %v976 = vunpack.c.h.b16 %v712
      %v977 = vunpack.c.l.b16 %v713
      %v978 = vunpack.c.h.b16 %v713
      %v979 = vunpack.c.l.b16 %v714
      %v980 = vunpack.c.l.b16 %v715
      %v981 = vunpack.c.h.b16 %v715
      %v982 = vunpack.c.l.b16 %v716
      %v983 = vunpack.c.h.b16 %v716
      %v984 = vunpack.c.l.b16 %v717
      %v985 = vunpack.c.l.b16 %v718
      %v986 = vunpack.c.h.b16 %v718
      %v987 = vunpack.c.l.b16 %v719
      %v988 = vunpack.c.h.b16 %v719
      %v989 = vunpack.c.l.b16 %v720
      %v990 = vunpack.c.l.b16 %v721
      %v991 = vunpack.c.h.b16 %v721
      %v992 = vunpack.c.l.b16 %v722
      %v993 = vunpack.c.h.b16 %v722
      %v994 = vunpack.c.l.b16 %v723
      %v995 = vunpack.c.l.b16 %v724
      %v996 = vunpack.c.h.b16 %v724
      %v997 = vunpack.c.l.b16 %v725
      %v998 = vunpack.c.h.b16 %v725
      %v999 = vunpack.c.l.b16 %v726
      %v1000 = vunpack.c.l.b16 %v727
      %v1001 = vunpack.c.h.b16 %v727
      %v1002 = vunpack.c.l.b16 %v728
      %v1003 = vunpack.c.h.b16 %v728
      %v1004 = vunpack.c.l.b16 %v729
      %v1005 = vunpack.c.l.b16 %v730
      %v1006 = vunpack.c.h.b16 %v730
      %v1007 = vunpack.c.l.b16 %v731
      %v1008 = vunpack.c.h.b16 %v731
      %v1009 = vunpack.c.l.b16 %v732
      %v1010 = vunpack.c.l.b16 %v733
      %v1011 = vunpack.c.h.b16 %v733
      %v1012 = vunpack.c.l.b16 %v734
      %v1013 = vunpack.c.h.b16 %v734
      %v1014 = vunpack.c.l.b16 %v735
      %v1015 = vunpack.c.l.b16 %v736
      %v1016 = vunpack.c.h.b16 %v736
      %v1017 = vunpack.c.l.b16 %v737
      %v1018 = vunpack.c.h.b16 %v737
      %v1019 = vunpack.c.l.b16 %v738
      %v1020 = vunpack.c.l.b16 %v739
      %v1021 = vunpack.c.h.b16 %v739
      %v1022 = vunpack.c.l.b16 %v740
      %v1023 = vunpack.c.h.b16 %v740
      %v1024 = vunpack.c.l.b16 %v741
      %v1025 = vpack.c.b16 %v870, %v865
      %v1026 = vpack.c.b16 %v871, %v866
      %v1027 = vpack.c.b16 %v872, %v867
      %v1028 = vpack.c.b16 %v873, %v868
      %v1029 = vpack.c.b16 %v874, %v869
      %v1030 = vpack.c.b16 %v880, %v875
      %v1031 = vpack.c.b16 %v881, %v876
      %v1032 = vpack.c.b16 %v882, %v877
      %v1033 = vpack.c.b16 %v883, %v878
      %v1034 = vpack.c.b16 %v884, %v879
      %v1035 = vpack.c.b16 %v890, %v885
      %v1036 = vpack.c.b16 %v891, %v886
      %v1037 = vpack.c.b16 %v892, %v887
      %v1038 = vpack.c.b16 %v893, %v888
      %v1039 = vpack.c.b16 %v894, %v889
      %v1040 = vpack.c.b16 %v900, %v895
      %v1041 = vpack.c.b16 %v901, %v896
      %v1042 = vpack.c.b16 %v902, %v897
      %v1043 = vpack.c.b16 %v903, %v898
      %v1044 = vpack.c.b16 %v904, %v899
      %v1045 = vpack.c.b16 %v910, %v905
      %v1046 = vpack.c.b16 %v911, %v906
      %v1047 = vpack.c.b16 %v912, %v907
      %v1048 = vpack.c.b16 %v913, %v908
      %v1049 = vpack.c.b16 %v914, %v909
      %v1050 = vpack.c.b16 %v920, %v915
      %v1051 = vpack.c.b16 %v921, %v916
      %v1052 = vpack.c.b16 %v922, %v917
      %v1053 = vpack.c.b16 %v923, %v918
      %v1054 = vpack.c.b16 %v924, %v919
      %v1055 = vpack.c.b16 %v930, %v925
      %v1056 = vpack.c.b16 %v931, %v926
      %v1057 = vpack.c.b16 %v932, %v927
      %v1058 = vpack.c.b16 %v933, %v928
      %v1059 = vpack.c.b16 %v934, %v929
      %v1060 = vpack.c.b16 %v940, %v935
      %v1061 = vpack.c.b16 %v941, %v936
      %v1062 = vpack.c.b16 %v942, %v937
      %v1063 = vpack.c.b16 %v943, %v938
      %v1064 = vpack.c.b16 %v944, %v939
      %v1065 = vpack.c.b16 %v950, %v945
      %v1066 = vpack.c.b16 %v951, %v946
      %v1067 = vpack.c.b16 %v952, %v947
      %v1068 = vpack.c.b16 %v953, %v948
      %v1069 = vpack.c.b16 %v954, %v949
      %v1070 = vpack.c.b16 %v960, %v955
      %v1071 = vpack.c.b16 %v961, %v956
      %v1072 = vpack.c.b16 %v962, %v957
      %v1073 = vpack.c.b16 %v963, %v958
      %v1074 = vpack.c.b16 %v964, %v959
      %v1075 = vpack.c.b16 %v970, %v965
      %v1076 = vpack.c.b16 %v971, %v966
      %v1077 = vpack.c.b16 %v972, %v967
      %v1078 = vpack.c.b16 %v973, %v968
      %v1079 = vpack.c.b16 %v974, %v969
      %v1080 = vpack.c.b16 %v980, %v975
      %v1081 = vpack.c.b16 %v981, %v976
      %v1082 = vpack.c.b16 %v982, %v977
      %v1083 = vpack.c.b16 %v983, %v978
      %v1084 = vpack.c.b16 %v984, %v979
      %v1085 = vpack.c.b16 %v990, %v985
      %v1086 = vpack.c.b16 %v991, %v986
      %v1087 = vpack.c.b16 %v992, %v987
      %v1088 = vpack.c.b16 %v993, %v988
      %v1089 = vpack.c.b16 %v994, %v989
      %v1090 = vpack.c.b16 %v1000, %v995
      %v1091 = vpack.c.b16 %v1001, %v996
      %v1092 = vpack.c.b16 %v1002, %v997
      %v1093 = vpack.c.b16 %v1003, %v998
      %v1094 = vpack.c.b16 %v1004, %v999
      %v1095 = vpack.c.b16 %v1010, %v1005
      %v1096 = vpack.c.b16 %v1011, %v1006
      %v1097 = vpack.c.b16 %v1012, %v1007
      %v1098 = vpack.c.b16 %v1013, %v1008
      %v1099 = vpack.c.b16 %v1014, %v1009
      %v1100 = vpack.c.b16 %v1020, %v1015
      %v1101 = vpack.c.b16 %v1021, %v1016
      %v1102 = vpack.c.b16 %v1022, %v1017
      %v1103 = vpack.c.b16 %v1023, %v1018
      %v1104 = vpack.c.b16 %v1024, %v1019
      %1185 = vmatprep.subr.bf16.mxu0 %v1061
      %1186 = vmatpush1.bf16.msra.mxu0 %v1060
      %1187 = vmatprep.subr.bf16.mxu0 %v1056
      %1188 = vmatpush1.bf16.msra.mxu0 %v1055
      %1189 = vmatprep.subr.bf16.mxu0 %v1051
      %1190 = vmatpush1.bf16.msra.mxu0 %v1050
      %1191 = vmatprep.subr.bf16.mxu0 %v1046
      %1192 = vmatpush1.bf16.msra.mxu0 %v1045
      %1193 = vmatprep.subr.bf16.mxu0 %v1041
      %1194 = vmatpush1.bf16.msra.mxu0 %v1040
      %1195 = vmatprep.subr.bf16.mxu0 %v1036
      %1196 = vmatpush1.bf16.msra.mxu0 %v1035
      %1197 = vmatprep.subr.bf16.mxu0 %v1031
      %1198 = vmatpush1.bf16.msra.mxu0 %v1030
      %1199 = vmatprep.subr.bf16.mxu0 %v1026
      %1200 = vmatpush1.bf16.msra.mxu0 %v1025
      %1201 = vmatprep.subr.bf16.mxu0 %v1101
      %1202 = vmatpush2.bf16.msra.mxu0 %v1100
      %1203 = vmatprep.subr.bf16.mxu0 %v1096
      %1204 = vmatpush2.bf16.msra.mxu0 %v1095
      %1205 = vmatprep.subr.bf16.mxu0 %v1091
      %1206 = vmatpush2.bf16.msra.mxu0 %v1090
      %1207 = vmatprep.subr.bf16.mxu0 %v1086
      %1208 = vmatpush2.bf16.msra.mxu0 %v1085
      %1209 = vmatprep.subr.bf16.mxu0 %v1081
      %1210 = vmatpush2.bf16.msra.mxu0 %v1080
      %1211 = vmatprep.subr.bf16.mxu0 %v1076
      %1212 = vmatpush2.bf16.msra.mxu0 %v1075
      %1213 = vmatprep.subr.bf16.mxu0 %v1071
      %1214 = vmatpush2.bf16.msra.mxu0 %v1070
      %1215 = vmatprep.subr.bf16.mxu0 %v1066
      %1216 = vmatpush2.bf16.msra.mxu0 %v1065
      %1217 = vmatprep.mubr.bf16.mxu0 %v645
      %1218 = vmatmul.mubr.bf16.gmra.mxu0 %v644
      %v1219 = vpop.f32.mrf.mxu0
      %v1220 = vadd.f32 %v747, %v1219
      %v1221 = vpop.f32.mrf.mxu0
      %v1222 = vadd.f32 %v751, %v1221
      %v1223 = vpop.f32.mrf.mxu0
      %v1224 = vadd.f32 %v747, %v1223
      %v1225 = vpop.f32.mrf.mxu0
      %v1226 = vadd.f32 %v751, %v1225
      %1227 = vdwg.mxu0
      %1228 = vmatprep.subr.bf16.mxu0 %v1063
      %1229 = vmatpush1.bf16.msra.mxu0 %v1062
      %1230 = vmatprep.subr.bf16.mxu0 %v1058
      %1231 = vmatpush1.bf16.msra.mxu0 %v1057
      %1232 = vmatprep.subr.bf16.mxu0 %v1053
      %1233 = vmatpush1.bf16.msra.mxu0 %v1052
      %1234 = vmatprep.subr.bf16.mxu0 %v1048
      %1235 = vmatpush1.bf16.msra.mxu0 %v1047
      %1236 = vmatprep.subr.bf16.mxu0 %v1043
      %1237 = vmatpush1.bf16.msra.mxu0 %v1042
      %1238 = vmatprep.subr.bf16.mxu0 %v1038
      %1239 = vmatpush1.bf16.msra.mxu0 %v1037
      %1240 = vmatprep.subr.bf16.mxu0 %v1033
      %1241 = vmatpush1.bf16.msra.mxu0 %v1032
      %1242 = vmatprep.subr.bf16.mxu0 %v1028
      %1243 = vmatpush1.bf16.msra.mxu0 %v1027
      %1244 = vmatprep.subr.bf16.mxu0 %v1103
      %1245 = vmatpush2.bf16.msra.mxu0 %v1102
      %1246 = vmatprep.subr.bf16.mxu0 %v1098
      %1247 = vmatpush2.bf16.msra.mxu0 %v1097
      %1248 = vmatprep.subr.bf16.mxu0 %v1093
      %1249 = vmatpush2.bf16.msra.mxu0 %v1092
      %1250 = vmatprep.subr.bf16.mxu0 %v1088
      %1251 = vmatpush2.bf16.msra.mxu0 %v1087
      %1252 = vmatprep.subr.bf16.mxu0 %v1083
      %1253 = vmatpush2.bf16.msra.mxu0 %v1082
      %1254 = vmatprep.subr.bf16.mxu0 %v1078
      %1255 = vmatpush2.bf16.msra.mxu0 %v1077
      %1256 = vmatprep.subr.bf16.mxu0 %v1073
      %1257 = vmatpush2.bf16.msra.mxu0 %v1072
      %1258 = vmatprep.subr.bf16.mxu0 %v1068
      %1259 = vmatpush2.bf16.msra.mxu0 %v1067
      %1260 = vmatprep.mubr.bf16.mxu0 %v645
      %1261 = vmatmul.mubr.bf16.gmra.mxu0 %v644
      %v1262 = vpop.f32.mrf.mxu0
      %v1263 = vadd.f32 %v755, %v1262
      %v1264 = vpop.f32.mrf.mxu0
      %v1265 = vadd.f32 %v759, %v1264
      %v1266 = vpop.f32.mrf.mxu0
      %v1267 = vadd.f32 %v755, %v1266
      %v1268 = vpop.f32.mrf.mxu0
      %v1269 = vadd.f32 %v759, %v1268
      %1270 = vdwg.mxu0
      %1271 = vmatprep.subr.bf16.mxu0 0
      %1272 = vmatpush1.bf16.msra.mxu0 %v1064
      %1273 = vmatprep.subr.bf16.mxu0 0
      %1274 = vmatpush1.bf16.msra.mxu0 %v1059
      %1275 = vmatprep.subr.bf16.mxu0 0
      %1276 = vmatpush1.bf16.msra.mxu0 %v1054
      %1277 = vmatprep.subr.bf16.mxu0 0
      %1278 = vmatpush1.bf16.msra.mxu0 %v1049
      %1279 = vmatprep.subr.bf16.mxu0 0
      %1280 = vmatpush1.bf16.msra.mxu0 %v1044
      %1281 = vmatprep.subr.bf16.mxu0 0
      %1282 = vmatpush1.bf16.msra.mxu0 %v1039
      %1283 = vmatprep.subr.bf16.mxu0 0
      %1284 = vmatpush1.bf16.msra.mxu0 %v1034
      %1285 = vmatprep.subr.bf16.mxu0 0
      %1286 = vmatpush1.bf16.msra.mxu0 %v1029
      %1287 = vmatprep.subr.bf16.mxu0 0
      %1288 = vmatpush2.bf16.msra.mxu0 %v1104
      %1289 = vmatprep.subr.bf16.mxu0 0
      %1290 = vmatpush2.bf16.msra.mxu0 %v1099
      %1291 = vmatprep.subr.bf16.mxu0 0
      %1292 = vmatpush2.bf16.msra.mxu0 %v1094
      %1293 = vmatprep.subr.bf16.mxu0 0
      %1294 = vmatpush2.bf16.msra.mxu0 %v1089
      %1295 = vmatprep.subr.bf16.mxu0 0
      %1296 = vmatpush2.bf16.msra.mxu0 %v1084
      %1297 = vmatprep.subr.bf16.mxu0 0
      %1298 = vmatpush2.bf16.msra.mxu0 %v1079
      %1299 = vmatprep.subr.bf16.mxu0 0
      %1300 = vmatpush2.bf16.msra.mxu0 %v1074
      %1301 = vmatprep.subr.bf16.mxu0 0
      %1302 = vmatpush2.bf16.msra.mxu0 %v1069
      %1303 = vmatprep.mubr.bf16.mxu0 %v645
      %1304 = vmatmul.mubr.bf16.gmra.mxu0 %v644
      %v1305 = vpop.f32.mrf.mxu0
      %v1306 = vadd.f32 %v763, %v1305
      %v1307 = vpop.f32.mrf.mxu0
      %v1308 = vpop.f32.mrf.mxu0
      %v1309 = vadd.f32 %v763, %v1308
      %v1310 = vpop.f32.mrf.mxu0
      %1311 = vdwg.mxu0
      %v1312 = vxor.u32 %v1220, 2147483648
      %v1313 = vxor.u32 %v1222, 2147483648
      %v1314 = vxor.u32 %v1263, 2147483648
      %v1315 = vxor.u32 %v1265, 2147483648
      %v1316 = vxor.u32 %v1306, 2147483648
      %v1317 = vxor.u32 %v1224, 2147483648
      %v1318 = vxor.u32 %v1226, 2147483648
      %v1319 = vxor.u32 %v1267, 2147483648
      %v1320 = vxor.u32 %v1269, 2147483648
      %v1321 = vxor.u32 %v1309, 2147483648
      %v1322 = vmul.f32 %v1312, 1.442695
      %v1323 = vpow.pop %v1322
      %v1324 = vmul.f32 %v1313, 1.442695
      %v1325 = vpow.pop %v1324
      %v1326 = vmul.f32 %v1314, 1.442695
      %v1327 = vpow.pop %v1326
      %v1328 = vmul.f32 %v1315, 1.442695
      %v1329 = vpow.pop %v1328
      %v1330 = vmul.f32 %v1316, 1.442695
      %v1331 = vpow.pop %v1330
      %v1332 = vmul.f32 %v1317, 1.442695
      %v1333 = vpow.pop %v1332
      %v1334 = vmul.f32 %v1318, 1.442695
      %v1335 = vpow.pop %v1334
      %v1336 = vmul.f32 %v1319, 1.442695
      %v1337 = vpow.pop %v1336
      %v1338 = vmul.f32 %v1320, 1.442695
      %v1339 = vpow.pop %v1338
      %v1340 = vmul.f32 %v1321, 1.442695
      %v1341 = vpow.pop %v1340
      %v1342 = vadd.f32 %v1323, 1.0
      %v1343 = vadd.f32 %v1325, 1.0
      %v1344 = vadd.f32 %v1327, 1.0
      %v1345 = vadd.f32 %v1329, 1.0
      %v1346 = vadd.f32 %v1331, 1.0
      %v1347 = vadd.f32 %v1333, 1.0
      %v1348 = vadd.f32 %v1335, 1.0
      %v1349 = vadd.f32 %v1337, 1.0
      %v1350 = vadd.f32 %v1339, 1.0
      %v1351 = vadd.f32 %v1341, 1.0
      %v1352 = vrcp.pop %v1342
      %v1353 = vmul.f32 1.0, %v1352
      %v1354 = vrcp.pop %v1343
      %v1355 = vmul.f32 1.0, %v1354
      %v1356 = vrcp.pop %v1344
      %v1357 = vmul.f32 1.0, %v1356
      %v1358 = vrcp.pop %v1345
      %v1359 = vmul.f32 1.0, %v1358
      %v1360 = vrcp.pop %v1346
      %v1361 = vmul.f32 1.0, %v1360
      %v1362 = vrcp.pop %v1347
      %v1363 = vmul.f32 1.0, %v1362
      %v1364 = vrcp.pop %v1348
      %v1365 = vmul.f32 1.0, %v1364
      %v1366 = vrcp.pop %v1349
      %v1367 = vmul.f32 1.0, %v1366
      %v1368 = vrcp.pop %v1350
      %v1369 = vmul.f32 1.0, %v1368
      %v1370 = vrcp.pop %v1351
      %v1371 = vmul.f32 1.0, %v1370
      %1372 = vst [vmem:[%s231] sm:$0xff] %v1353
      %1373 = vst [vmem:[%s231 + $0x8] sm:$0xff] %v1355
      %1374 = vst [vmem:[%s231 + $0x10] sm:$0xff] %v1357
      %1375 = vst [vmem:[%s231 + $0x18] sm:$0xff] %v1359
      %1376 = vst [vmem:[%s231 + $0x20] sm:$0xff] %v1361
      %1377 = vst [vmem:[%s231 + $0x28] sm:$0xff] %v1363
      %1378 = vst [vmem:[%s231 + $0x30] sm:$0xff] %v1365
      %1379 = vst [vmem:[%s231 + $0x38] sm:$0xff] %v1367
      %1380 = vst [vmem:[%s231 + $0x40] sm:$0xff] %v1369
      %1381 = vst [vmem:[%s231 + $0x48] sm:$0xff] %v1371
      %s1382 = smul.u32 2, %s16
      %p1383 = scmp.lt.s32.totalorder %s1382, 3
      %s1384 = scalar_select %p1383, %s1382, 3
      %s1385 = smul.addr %s1384, 5
      %s1386 = smul.addr %s1385, 8
      %s1387 = scalar_lea.vmem %s5, %s1386
      // Predicated region
      $region41: #{shallow_decoder_forward.1} parent=39 // pred_check
        %p1388 = pneg %p144
      $region42: #{shallow_decoder_forward.1} parent=39 // pred_check_branch
        %1390 = sbr.rel (%p1388) target = $region44
      $region43: #{shallow_decoder_forward.1} parent=39 // pred_region
        %s1391 = smul.u32 2, %s16
      $region44: #{shallow_decoder_forward.1} parent=39 // pred_fallthru
        _
    $region40: #{shallow_decoder_forward.1} parent=5 // pred_fallthru
      _
    %p1392 = scmp.le.s32.totalorder 2, %s11
    // Predicated region
    $region45: #{shallow_decoder_forward.1} parent=5 // pred_check
      %p1393 = pneg %p1392
    $region46: #{shallow_decoder_forward.1} parent=5 // pred_check_branch
      %1395 = sbr.rel (%p1393) target = $region48
    $region47: #{shallow_decoder_forward.1} parent=5 // pred_region
      %s1396 = ssub.s32 %s11, 2
      // Predicated region
      $region49: #{shallow_decoder_forward.1} parent=47 // pred_check
        %p1397 = pneg %p150
      $region50: #{shallow_decoder_forward.1} parent=47 // pred_check_branch
        %1399 = sbr.rel (%p1397) target = $region52
      $region51: #{shallow_decoder_forward.1} parent=47 // pred_region
        %s1400 = smul.u32 2, %s17
        %p1401 = scmp.lt.s32.totalorder %s1400, 3
        %s1402 = scalar_select %p1401, %s1400, 3
        %s1403 = smul.addr %s1402, 5
        %s1404 = smul.addr %s1403, 8
        %s1405 = scalar_lea.vmem %s5, %s1404
      $region52: #{shallow_decoder_forward.1} parent=47 // pred_fallthru
        _
    $region48: #{shallow_decoder_forward.1} parent=5 // pred_fallthru
      _
  $region6: #{shallow_decoder_forward.1} parent=0 // loop_footer
    %s15 = sadd.s32 1, %s11
  $region7: #{shallow_decoder_forward.1} parent=0 // loop_footer_branch
    %10 = sbr.rel target = $region3
  $region8: #{shallow_decoder_forward.1} parent=0 // loop_exit
    _

</llo_original>
